<compile_context>
chip_gen: v5e
topology: v5e:2x2
jax: 0.10.0
libtpu: 0.0.40
codegen_flags: <defaults>
</compile_context>

<pallas_src>
import math

import jax
import jax.numpy as jnp
from jax.experimental import pallas as pl
from jax.experimental.pallas import tpu as pltpu

_MAX_TB = 8192  # per-tile cap: keeps the VMEM budget ~<32 MiB on every gen


def _round_up(x: int, m: int) -> int:
    return ((x + m - 1) // m) * m


def _choose_tb(B: int, D: int, max_tb: int) -> int:
    """Pick a lane-dense (multiple of 128) batch tile.

    Targets >= ~1 MiB of f32 x per grid step so the ~0.35 us fixed per-step
    pipeline overhead is amortized; splits evenly when multiple tiles are
    needed so the grid stays >= 2 (v7x megacore sharding)."""
    target = max(128, (1 << 20) // (4 * D))
    target = min(_round_up(target, 128), max_tb)
    Bp = _round_up(B, 128)
    if Bp <= target:
        return Bp  # single tile covers the whole (padded) batch
    n_tiles = pl.cdiv(Bp, target)  # >= 2
    return _round_up(pl.cdiv(Bp, n_tiles), 128)


def critic_kernel(x_ref, w1_ref, b1_ref, w2_ref, b2_ref, o_ref):
    # x:  (TB, D)  batch tile (pipelined / double-buffered by BlockSpec)
    # w1: (H, D)   PyTorch layout [out, in], VMEM-resident across grid steps
    # b1: (H, 1)   VMEM-resident
    # w2: (H, 1)   VMEM-resident (second-layer weight as a column)
    # b2: (1,)     SMEM scalar
    # o:  (1, TB)  lane-dense output slab (batch on the lane axis)
    # h^T = W1 @ x^T -> (H, TB); contraction over D on the MXU, f32 accumulate.
    h = jax.lax.dot_general(
        w1_ref[...], x_ref[...],
        dimension_numbers=(((1,), (1,)), ((), ())),
        preferred_element_type=jnp.float32,
    )
    h = jnp.maximum(h + b1_ref[...], 0.0)  # bias (lane-broadcast) + ReLU on the VPU
    # Second linear (H -> 1): VPU multiply + XLU sublane reduction, no N=1 MXU op.
    v = jnp.sum(h * w2_ref[...], axis=0, keepdims=True) + b2_ref[0]  # (1, TB)
    o_ref[...] = v.astype(o_ref.dtype)


def critic_forward(feature, w1, b1, w2, b2, *, max_tb=_MAX_TB, use_kernel=None):
    """feature: [B, D] -> value [B, 1] f32 == ReLU(x @ W1^T + b1) @ W2^T + b2."""
    B, D = feature.shape
    H = w1.shape[0]

    if use_kernel is None:
        use_kernel = B > 128
    if not use_kernel:
        # Tiny-batch fast path (e.g. per-step RL inference): launch + pad +
        # output-relayout overhead dwarfs the actual work.
        h = jnp.maximum(
            jnp.dot(feature, w1.T.astype(feature.dtype),
                    preferred_element_type=jnp.float32) + b1[:, 0], 0.0)
        return (h @ w2 + b2).astype(jnp.float32)

    # Accept bf16 features without an extra HBM pass: cast only the tiny,
    # VMEM-resident w1 to the feature dtype; accumulation stays f32.
    if w1.dtype != feature.dtype:
        w1 = w1.astype(feature.dtype)

    TB = _choose_tb(B, D, max_tb)
    Bp = _round_up(B, TB)
    if Bp != B:
        feature = jnp.pad(feature, ((0, Bp - B), (0, 0)))
    n_tiles = Bp // TB

    # Per-tile VMEM budget: lane-padded x double-buffer (TB*128*4*2) plus a
    # few (H, TB) f32 h temporaries, plus slack for weights/output/compiler.
    vmem_budget = int(2 * TB * 128 * 4 + 6 * TB * H * 4 + (4 << 20))
    vmem_limit = min(max(vmem_budget, 32 << 20), 56 << 20)

    x_bytes = Bp * D * feature.dtype.itemsize
    w_bytes = (w1.size * w1.dtype.itemsize + b1.size * 4 + w2.size * 4 + 4)
    cost = pl.CostEstimate(
        flops=2 * Bp * D * H + 2 * Bp * H,
        transcendentals=0,
        bytes_accessed=x_bytes + 4 * Bp + w_bytes,
    )

    out = pl.pallas_call(
        critic_kernel,
        out_shape=jax.ShapeDtypeStruct((1, Bp), jnp.float32),
        grid_spec=pltpu.PrefetchScalarGridSpec(
            num_scalar_prefetch=0,
            grid=(n_tiles,),
            in_specs=[
                pl.BlockSpec((TB, D), lambda i: (i, 0)),            # x tile
                pl.BlockSpec((H, D), lambda i: (0, 0)),             # w1 (resident)
                pl.BlockSpec((H, 1), lambda i: (0, 0)),             # b1 (resident)
                pl.BlockSpec((H, 1), lambda i: (0, 0)),             # w2 col (resident)
                pl.BlockSpec(memory_space=pltpu.MemorySpace.SMEM),  # b2 scalar
            ],
            out_specs=pl.BlockSpec((1, TB), lambda i: (0, i)),
        ),
        compiler_params=pltpu.CompilerParams(
            dimension_semantics=("parallel",),   # batch tiles across TCs (v7x)
            vmem_limit_bytes=vmem_limit,
        ),
        cost_estimate=cost,
    )(feature, w1, b1, w2, b2)

    # (1, Bp) lane-dense slab -> (B, 1) column, dropping padded rows.
    return out.reshape(Bp, 1)[:B]


def init_critic_params(key, input_dim, hidden=64):
    # Mirrors nn.init.kaiming_normal_(weight, gain=calculate_gain('relu')):
    # std = sqrt(2) / sqrt(fan_in); biases zero. PyTorch [out, in] layout kept.
    k1, k2 = jax.random.split(key)
    gain = math.sqrt(2.0)
    w1 = jax.random.normal(k1, (hidden, input_dim), jnp.float32) * (gain / math.sqrt(input_dim))
    b1 = jnp.zeros((hidden, 1), jnp.float32)
    w2 = (jax.random.normal(k2, (1, hidden), jnp.float32) * (gain / math.sqrt(hidden))).T  # (H, 1)
    b2 = jnp.zeros((1,), jnp.float32)
    return w1, b1, w2, b2


def _reference(feature, w1, b1, w2, b2):
    h = jnp.maximum(feature.astype(jnp.float32) @ w1.T + b1[:, 0], 0.0)
    return h @ w2 + b2  # (B, 1)


if __name__ == "__main__":
    key = jax.random.PRNGKey(0)
    k_feat, k_param, k_big = jax.random.split(key, 3)

    # Small case matching the module: input_dim=32, hidden=64, value dim=1.
    B, D = 8, 32
    feature = jax.random.normal(k_feat, (B, D), jnp.float32)
    w1, b1, w2, b2 = init_critic_params(k_param, D, hidden=64)

    # Force the Pallas kernel even at tiny B (single 128-lane tile).
    value = jax.block_until_ready(
        critic_forward(feature, w1, b1, w2, b2, use_kernel=True))
    ref = _reference(feature, w1, b1, w2, b2)
    assert value.shape == (B, 1)
    assert jnp.allclose(value, ref, atol=1e-4, rtol=1e-4)

    # Default small-batch fast path (plain jnp) agrees too.
    value_fast = jax.block_until_ready(critic_forward(feature, w1, b1, w2, b2))
    assert jnp.allclose(value_fast, ref, atol=1e-4, rtol=1e-4)

    # Multi-tile case: small max_tb forces a 3-step grid, exercising resident
    # weights, the "parallel" batch axis and tail padding.
    B2 = 700
    feature2 = jax.random.normal(k_big, (B2, D), jnp.float32)
    value2 = jax.block_until_ready(
        critic_forward(feature2, w1, b1, w2, b2, max_tb=256))
    ref2 = _reference(feature2, w1, b1, w2, b2)
    assert value2.shape == (B2, 1)
    assert jnp.allclose(value2, ref2, atol=1e-4, rtol=1e-4)

    # Same batch through the default tile-size selection (single big tile).
    value3 = jax.block_until_ready(critic_forward(feature2, w1, b1, w2, b2))
    assert jnp.allclose(value3, ref2, atol=1e-4, rtol=1e-4)

    # bf16 feature path (w1 cast once in the wrapper, f32 accumulation).
    value_bf16 = jax.block_until_ready(
        critic_forward(feature2.astype(jnp.bfloat16), w1, b1, w2, b2,
                       use_kernel=True))
    assert jnp.allclose(value_bf16, ref2, atol=2e-2, rtol=2e-2)

    print("KERNEL_OK")
</pallas_src>

<mosaic_0001>
module attributes {stable_mosaic.version = 11 : i64} {
  func.func @critic_kernel(%arg0: i32, %arg1: memref<128x32xf32, #tpu.memory_space<vmem>>, %arg2: memref<64x32xf32, #tpu.memory_space<vmem>>, %arg3: memref<64x1xf32, #tpu.memory_space<vmem>>, %arg4: memref<64x1xf32, #tpu.memory_space<vmem>>, %arg5: memref<1xf32, #tpu.memory_space<smem>>, %arg6: memref<1x128xf32, #tpu.memory_space<vmem>>) attributes {dimension_semantics = [#tpu.dimension_semantics<parallel>], iteration_bounds = array<i64: 1>, scalar_prefetch = 0 : i64, scratch_operands = 0 : i64, tpu.core_type = #tpu.core_type<tc>, window_params = [{transform_indices = @transform_0, window_bounds = array<i64: 128, 32>}, {pipeline_mode = #tpu.pipeline_mode<synchronous>, transform_indices = @transform_1, window_bounds = array<i64: 64, 32>}, {pipeline_mode = #tpu.pipeline_mode<synchronous>, transform_indices = @transform_2, window_bounds = array<i64: 64, 1>}, {pipeline_mode = #tpu.pipeline_mode<synchronous>, transform_indices = @transform_3, window_bounds = array<i64: 64, 1>}, {transform_indices = @transform_4, window_bounds = array<i64: 1>}, {transform_indices = @transform_5, window_bounds = array<i64: 1, 128>}]} {
    %c0 = arith.constant 0 : index
    %c0_0 = arith.constant 0 : index
    %0 = vector.load %arg2[%c0, %c0_0] : memref<64x32xf32, #tpu.memory_space<vmem>>, vector<64x32xf32>
    %c0_1 = arith.constant 0 : index
    %c0_2 = arith.constant 0 : index
    %1 = vector.load %arg1[%c0_1, %c0_2] : memref<128x32xf32, #tpu.memory_space<vmem>>, vector<128x32xf32>
    %cst = arith.constant dense<0.000000e+00> : vector<64x128xf32>
    %2 = tpu.matmul %0, %1, %cst {dimension_numbers = #tpu.dot_dimension_numbers<[1], [1], [0], [0], [0, 0, 1, 0], [], []>} : vector<64x32xf32>, vector<128x32xf32>, vector<64x128xf32> -> vector<64x128xf32>
    %c0_3 = arith.constant 0 : index
    %c0_4 = arith.constant 0 : index
    %3 = vector.load %arg3[%c0_3, %c0_4] : memref<64x1xf32, #tpu.memory_space<vmem>>, vector<64x1xf32>
    %4 = vector.broadcast %3 : vector<64x1xf32> to vector<64x128xf32>
    %5 = arith.addf %2, %4 : vector<64x128xf32>
    %cst_5 = arith.constant 0.000000e+00 : f32
    %6 = vector.broadcast %cst_5 : f32 to vector<64x128xf32>
    %7 = arith.maximumf %5, %6 : vector<64x128xf32>
    %c0_6 = arith.constant 0 : index
    %c0_7 = arith.constant 0 : index
    %8 = vector.load %arg4[%c0_6, %c0_7] : memref<64x1xf32, #tpu.memory_space<vmem>>, vector<64x1xf32>
    %9 = vector.broadcast %8 : vector<64x1xf32> to vector<64x128xf32>
    %10 = arith.mulf %7, %9 : vector<64x128xf32>
    %cst_8 = arith.constant dense<0.000000e+00> : vector<128xf32>
    %11 = vector.multi_reduction <add>, %10, %cst_8 [0] : vector<64x128xf32> to vector<128xf32>
    %12 = vector.shape_cast %11 : vector<128xf32> to vector<1x128xf32>
    %c0_9 = arith.constant 0 : index
    %13 = memref.load %arg5[%c0_9] : memref<1xf32, #tpu.memory_space<smem>>
    %14 = vector.broadcast %13 : f32 to vector<1x128xf32>
    %15 = arith.addf %12, %14 : vector<1x128xf32>
    %c0_10 = arith.constant 0 : index
    %c0_11 = arith.constant 0 : index
    %16 = vector.load %arg6[%c0_10, %c0_11] : memref<1x128xf32, #tpu.memory_space<vmem>>, vector<1x128xf32>
    tpu.vector_store %arg6[%c0_10, %c0_11], %15 {strides = array<i32>} : memref<1x128xf32, #tpu.memory_space<vmem>>, vector<1x128xf32>,
    return
  }
  func.func @transform_0(%arg0: i32) -> (i32, i32) {
    %c0_i32 = arith.constant 0 : i32
    %c0_i32_0 = arith.constant 0 : i32
    return %arg0, %c0_i32 : i32, i32
  }
  func.func @transform_1(%arg0: i32) -> (i32, i32) {
    %c0_i32 = arith.constant 0 : i32
    %c0_i32_0 = arith.constant 0 : i32
    %c0_i32_1 = arith.constant 0 : i32
    return %c0_i32, %c0_i32_0 : i32, i32
  }
  func.func @transform_2(%arg0: i32) -> (i32, i32) {
    %c0_i32 = arith.constant 0 : i32
    %c0_i32_0 = arith.constant 0 : i32
    %c0_i32_1 = arith.constant 0 : i32
    return %c0_i32, %c0_i32_0 : i32, i32
  }
  func.func @transform_3(%arg0: i32) -> (i32, i32) {
    %c0_i32 = arith.constant 0 : i32
    %c0_i32_0 = arith.constant 0 : i32
    %c0_i32_1 = arith.constant 0 : i32
    return %c0_i32, %c0_i32_0 : i32, i32
  }
  func.func @transform_4(%arg0: i32) -> i32 {
    %c0_i32 = arith.constant 0 : i32
    %c0_i32_0 = arith.constant 0 : i32
    return %c0_i32 : i32
  }
  func.func @transform_5(%arg0: i32) -> (i32, i32) {
    %c0_i32 = arith.constant 0 : i32
    %c0_i32_0 = arith.constant 0 : i32
    return %c0_i32, %arg0 : i32, i32
  }
}

</mosaic_0001>

<llo_original>
// kernel: tpu_custom_call.1
$region0: #{tpu_custom_call.1}
  #allocation0 [shape = 'u32[]', space=smem, size = 0x4, offset = 0x4, fixed_abs, tag = 'smem constant byte address 0x4 - core index']
  #allocation1 [shape = 'u32[72,128]{1,0:T(1,128)}', space=vmem, size = 0x9000, scoped, tag = 'internal scratch']
  #allocation2 [shape = 'f32[1]{0:T(128)S(6)}', space=smem, size = 0x200, scoped, tag = 'scoped memory for tpu_custom_call.1']
  %s0 = inlined_call_operand.vmem [shape: f32[128,32], index: 0, kind: input, shape index: {}]
  %s1 = inlined_call_operand.vmem [shape: f32[64,32], index: 1, kind: input, shape index: {}]
  %s2 = inlined_call_operand.vmem [shape: f32[64,1], index: 2, kind: input, shape index: {}]
  %s3 = inlined_call_operand.vmem [shape: f32[64,1], index: 3, kind: input, shape index: {}]
  %s4 = inlined_call_operand.<no memory space> [shape: f32[1], index: 4, kind: input, shape index: {}]
  %s5 = inlined_call_operand.hbm [shape: f32[1,128], index: 5, kind: output, shape index: {}]
  %s6 = sld [smem:[#allocation0]]
  $region30: #{tpu_custom_call.1} parent=0
    _
  %s8 = ssub.s32 1, %s6
  %s9 = scalar_select 0, %s8, %s6
  %10 = sst [smem:[#allocation2]] %s4
  $region1: #{tpu_custom_call.1} parent=0
    #allocation3 [shape = 'u8[512]{0}', space=vmem, size = 0x400, scoped, tag = 'output window, operand 0, single buffered']
    #allocation4 [shape = 's32[1]{0}', space=sflag, size = 0x4, scoped, tag = 'scoped memory for tpu_custom_call.1']
    %11 = vsyncpa [#allocation4], 0
    // Predicated region
    $region2: #{tpu_custom_call.1} parent=1 // pred_check
      _
    $region3: #{tpu_custom_call.1} parent=1 // pred_check_branch
      %13 = sbr.rel (0) target = $region5
    $region4: #{tpu_custom_call.1} parent=1 // pred_region
      _
    $region5: #{tpu_custom_call.1} parent=1 // pred_fallthru
      _
    // Predicated region
    $region6: #{tpu_custom_call.1} parent=1 // pred_check
      _
    $region7: #{tpu_custom_call.1} parent=1 // pred_check_branch
      %15 = sbr.rel (0) target = $region9
    $region8: #{tpu_custom_call.1} parent=1 // pred_region
      _
    $region9: #{tpu_custom_call.1} parent=1 // pred_fallthru
      _
    // Predicated region
    $region10: #{tpu_custom_call.1} parent=1 // pred_check
      _
    $region11: #{tpu_custom_call.1} parent=1 // pred_check_branch
      %17 = sbr.rel (0) target = $region13
    $region12: #{tpu_custom_call.1} parent=1 // pred_region
      _
    $region13: #{tpu_custom_call.1} parent=1 // pred_fallthru
      _
    // Predicated region
    $region14: #{tpu_custom_call.1} parent=1 // pred_check
      _
    $region15: #{tpu_custom_call.1} parent=1 // pred_check_branch
      %19 = sbr.rel (0) target = $region17
    $region16: #{tpu_custom_call.1} parent=1 // pred_region
      _
    $region17: #{tpu_custom_call.1} parent=1 // pred_fallthru
      _
    // Predicated region
    $region18: #{tpu_custom_call.1} parent=1 // pred_check
      _
    $region19: #{tpu_custom_call.1} parent=1 // pred_check_branch
      %21 = sbr.rel (0) target = $region21
    $region20: #{tpu_custom_call.1} parent=1 // pred_region
      _
    $region21: #{tpu_custom_call.1} parent=1 // pred_fallthru
      _
    %v22 = vld [vmem:[%s1] sm:$0xff]
    %v23 = vld [vmem:[%s1 + $0x8] sm:$0xff]
    %v24 = vld [vmem:[%s1 + $0x10] sm:$0xff]
    %v25 = vld [vmem:[%s1 + $0x18] sm:$0xff]
    %v26 = vld [vmem:[%s1 + $0x20] sm:$0xff]
    %v27 = vld [vmem:[%s1 + $0x28] sm:$0xff]
    %v28 = vld [vmem:[%s1 + $0x30] sm:$0xff]
    %v29 = vld [vmem:[%s1 + $0x38] sm:$0xff]
    %v30 = vld [vmem:[%s0] sm:$0xff]
    %v31 = vld [vmem:[%s0 + $0x8] sm:$0xff]
    %v32 = vld [vmem:[%s0 + $0x10] sm:$0xff]
    %v33 = vld [vmem:[%s0 + $0x18] sm:$0xff]
    %v34 = vld [vmem:[%s0 + $0x20] sm:$0xff]
    %v35 = vld [vmem:[%s0 + $0x28] sm:$0xff]
    %v36 = vld [vmem:[%s0 + $0x30] sm:$0xff]
    %v37 = vld [vmem:[%s0 + $0x38] sm:$0xff]
    %v38 = vld [vmem:[%s0 + $0x40] sm:$0xff]
    %v39 = vld [vmem:[%s0 + $0x48] sm:$0xff]
    %v40 = vld [vmem:[%s0 + $0x50] sm:$0xff]
    %v41 = vld [vmem:[%s0 + $0x58] sm:$0xff]
    %v42 = vld [vmem:[%s0 + $0x60] sm:$0xff]
    %v43 = vld [vmem:[%s0 + $0x68] sm:$0xff]
    %v44 = vld [vmem:[%s0 + $0x70] sm:$0xff]
    %v45 = vld [vmem:[%s0 + $0x78] sm:$0xff]
    %v46 = vld [vmem:[%s2] sm:$0xff]
    %v47 = vld [vmem:[%s2 + $0x8] sm:$0xff]
    %v48 = vld [vmem:[%s2 + $0x10] sm:$0xff]
    %v49 = vld [vmem:[%s2 + $0x18] sm:$0xff]
    %v50 = vld [vmem:[%s2 + $0x20] sm:$0xff]
    %v51 = vld [vmem:[%s2 + $0x28] sm:$0xff]
    %v52 = vld [vmem:[%s2 + $0x30] sm:$0xff]
    %v53 = vld [vmem:[%s2 + $0x38] sm:$0xff]
    %55 = vset.pattern.permute.xlu0 0
    %56 = vperm.xlu0 %55, %v46
    %v57 = vpop.permute.xlu0 %56
    %60 = vset.pattern.permute.xlu0 0
    %61 = vperm.xlu0 %60, %v47
    %v62 = vpop.permute.xlu0 %61
    %65 = vset.pattern.permute.xlu0 0
    %66 = vperm.xlu0 %65, %v48
    %v67 = vpop.permute.xlu0 %66
    %70 = vset.pattern.permute.xlu0 0
    %71 = vperm.xlu0 %70, %v49
    %v72 = vpop.permute.xlu0 %71
    %75 = vset.pattern.permute.xlu0 0
    %76 = vperm.xlu0 %75, %v50
    %v77 = vpop.permute.xlu0 %76
    %80 = vset.pattern.permute.xlu0 0
    %81 = vperm.xlu0 %80, %v51
    %v82 = vpop.permute.xlu0 %81
    %85 = vset.pattern.permute.xlu0 0
    %86 = vperm.xlu0 %85, %v52
    %v87 = vpop.permute.xlu0 %86
    %90 = vset.pattern.permute.xlu0 0
    %91 = vperm.xlu0 %90, %v53
    %v92 = vpop.permute.xlu0 %91
    %vm94 = vcmask 261120
    %v96 = vsel %vm94, %v22, 0
    %v99 = vsel %vm94, %v23, 0
    %v102 = vsel %vm94, %v24, 0
    %v105 = vsel %vm94, %v25, 0
    %v108 = vsel %vm94, %v26, 0
    %v111 = vsel %vm94, %v27, 0
    %v114 = vsel %vm94, %v28, 0
    %v117 = vsel %vm94, %v29, 0
    %v120 = vsel %vm94, %v30, 0
    %v123 = vsel %vm94, %v31, 0
    %v126 = vsel %vm94, %v32, 0
    %v129 = vsel %vm94, %v33, 0
    %v132 = vsel %vm94, %v34, 0
    %v135 = vsel %vm94, %v35, 0
    %v138 = vsel %vm94, %v36, 0
    %v141 = vsel %vm94, %v37, 0
    %v144 = vsel %vm94, %v38, 0
    %v147 = vsel %vm94, %v39, 0
    %v150 = vsel %vm94, %v40, 0
    %v153 = vsel %vm94, %v41, 0
    %v156 = vsel %vm94, %v42, 0
    %v159 = vsel %vm94, %v43, 0
    %v162 = vsel %vm94, %v44, 0
    %v165 = vsel %vm94, %v45, 0
    %167 = vmatpush.xpose.msra.mxu0 %v165
    %168 = vmatpush.xpose.msra.mxu0 %v162
    %169 = vmatpush.xpose.msra.mxu0 %v159
    %170 = vmatpush.xpose.msra.mxu0 %v156
    %171 = vmatpush.xpose.msra.mxu0 %v153
    %172 = vmatpush.xpose.msra.mxu0 %v150
    %173 = vmatpush.xpose.msra.mxu0 %v147
    %174 = vmatpush.xpose.msra.mxu0 %v144
    %175 = vmatpush.xpose.msra.mxu0 %v141
    %176 = vmatpush.xpose.msra.mxu0 %v138
    %177 = vmatpush.xpose.msra.mxu0 %v135
    %178 = vmatpush.xpose.msra.mxu0 %v132
    %179 = vmatpush.xpose.msra.mxu0 %v129
    %180 = vmatpush.xpose.msra.mxu0 %v126
    %181 = vmatpush.xpose.msra.mxu0 %v123
    %182 = vmatpush.xpose.msra.mxu0 %v120
    %183 = vmatmul.f32.gmra.mxu0 %v96
    %v184 = vpop.f32.mrf.mxu0
    %v185 = vadd.f32 %v57, %v184
    %186 = vmatmul.f32.gmra.mxu0 %v99
    %v187 = vpop.f32.mrf.mxu0
    %v188 = vadd.f32 %v62, %v187
    %189 = vmatmul.f32.gmra.mxu0 %v102
    %v190 = vpop.f32.mrf.mxu0
    %v191 = vadd.f32 %v67, %v190
    %192 = vmatmul.f32.gmra.mxu0 %v105
    %v193 = vpop.f32.mrf.mxu0
    %v194 = vadd.f32 %v72, %v193
    %195 = vmatmul.f32.gmra.mxu0 %v108
    %v196 = vpop.f32.mrf.mxu0
    %v197 = vadd.f32 %v77, %v196
    %198 = vmatmul.f32.gmra.mxu0 %v111
    %v199 = vpop.f32.mrf.mxu0
    %v200 = vadd.f32 %v82, %v199
    %201 = vmatmul.f32.gmra.mxu0 %v114
    %v202 = vpop.f32.mrf.mxu0
    %v203 = vadd.f32 %v87, %v202
    %204 = vmatmul.f32.gmra.mxu0 %v117
    %v205 = vpop.f32.mrf.mxu0
    %v206 = vadd.f32 %v92, %v205
    %207 = vdwg.mxu0
    %v208 = vmax.f32 %v185, 0.0
    %v209 = vmax.f32 %v188, 0.0
    %v210 = vmax.f32 %v191, 0.0
    %v211 = vmax.f32 %v194, 0.0
    %v212 = vmax.f32 %v197, 0.0
    %v213 = vmax.f32 %v200, 0.0
    %v214 = vmax.f32 %v203, 0.0
    %v215 = vmax.f32 %v206, 0.0
    %v216 = vld [vmem:[%s3] sm:$0xff]
    %v217 = vld [vmem:[%s3 + $0x8] sm:$0xff]
    %v218 = vld [vmem:[%s3 + $0x10] sm:$0xff]
    %v219 = vld [vmem:[%s3 + $0x18] sm:$0xff]
    %v220 = vld [vmem:[%s3 + $0x20] sm:$0xff]
    %v221 = vld [vmem:[%s3 + $0x28] sm:$0xff]
    %v222 = vld [vmem:[%s3 + $0x30] sm:$0xff]
    %v223 = vld [vmem:[%s3 + $0x38] sm:$0xff]
    %225 = vset.pattern.permute.xlu0 0
    %226 = vperm.xlu0 %225, %v216
    %v227 = vpop.permute.xlu0 %226
    %230 = vset.pattern.permute.xlu0 0
    %231 = vperm.xlu0 %230, %v217
    %v232 = vpop.permute.xlu0 %231
    %235 = vset.pattern.permute.xlu0 0
    %236 = vperm.xlu0 %235, %v218
    %v237 = vpop.permute.xlu0 %236
    %240 = vset.pattern.permute.xlu0 0
    %241 = vperm.xlu0 %240, %v219
    %v242 = vpop.permute.xlu0 %241
    %245 = vset.pattern.permute.xlu0 0
    %246 = vperm.xlu0 %245, %v220
    %v247 = vpop.permute.xlu0 %246
    %250 = vset.pattern.permute.xlu0 0
    %251 = vperm.xlu0 %250, %v221
    %v252 = vpop.permute.xlu0 %251
    %255 = vset.pattern.permute.xlu0 0
    %256 = vperm.xlu0 %255, %v222
    %v257 = vpop.permute.xlu0 %256
    %260 = vset.pattern.permute.xlu0 0
    %261 = vperm.xlu0 %260, %v223
    %v262 = vpop.permute.xlu0 %261
    %v264 = vmul.f32 %v208, %v227
    %v265 = vmul.f32 %v209, %v232
    %v266 = vmul.f32 %v210, %v237
    %v267 = vmul.f32 %v211, %v242
    %v268 = vmul.f32 %v212, %v247
    %v269 = vmul.f32 %v213, %v252
    %v270 = vmul.f32 %v214, %v257
    %v271 = vmul.f32 %v215, %v262
    %v272 = vadd.f32 %v264, %v265
    %v273 = vadd.f32 %v272, %v266
    %v274 = vadd.f32 %v273, %v267
    %v275 = vadd.f32 %v274, %v268
    %v276 = vadd.f32 %v275, %v269
    %v277 = vadd.f32 %v276, %v270
    %v278 = vadd.f32 %v277, %v271
    %v279 = vrot.slane %v278, 4
    %v280 = vadd.f32 %v278, %v279
    %v281 = vrot.slane %v280, 2
    %v282 = vadd.f32 %v280, %v281
    %v283 = vrot.slane %v282, 1
    %v284 = vadd.f32 %v282, %v283
    %s285 = sld [smem:[#allocation2]]
    %v286 = vstv %s285
    %v287 = vadd.f32 %v284, %v286
    %288 = vst [vmem:[#allocation3] sm:$0x1] %v287
    // Predicated region
    $region22: #{tpu_custom_call.1} parent=1 // pred_check
      _
    $region23: #{tpu_custom_call.1} parent=1 // pred_check_branch
      %290 = sbr.rel (0) target = $region25
    $region24: #{tpu_custom_call.1} parent=1 // pred_region
      %292 = vsyncadd [#allocation4], 0
      %s294 = sshll.u32 [#allocation3], 4
      %s295 = int_to_ptr.vmem [resolvable:$true] %s294
      %s296 = sshll.u32 %s5, 4
      %s297 = int_to_ptr.hbm [resolvable:$true] %s296
      %299 = dma.vmem_to_hbm [thread:$0]  %s295, 16, %s297, [#allocation4]
    $region25: #{tpu_custom_call.1} parent=1 // pred_fallthru
      _
    // Predicated region
    $region26: #{tpu_custom_call.1} parent=1 // pred_check
      _
    $region27: #{tpu_custom_call.1} parent=1 // pred_check_branch
      %301 = sbr.rel (0) target = $region29
    $region28: #{tpu_custom_call.1} parent=1 // pred_region
      %303 = dma.done [#allocation4], 16
    $region29: #{tpu_custom_call.1} parent=1 // pred_fallthru
      _
    %304 = vsyncpa [#allocation4], 1

</llo_original>
